<compile_context>
chip_gen: v7x
topology: tpu7x:2x2x1
jax: 0.10.0
libtpu: 0.0.40
codegen_flags: <defaults>
</compile_context>

<pallas_src>
import functools

import jax
import jax.numpy as jnp
from jax.experimental import pallas as pl
from jax.experimental.pallas import tpu as pltpu


# ----------------------------------------------------------------------------- kernel
def _fused_lstm_kernel(x_ref, h0_ref, c0_ref, w_ref, b_ref,
                       h_out_ref, c_out_ref, xcat_ref):
    """One grid step == one LSTM layer.

    x_ref    : (Bp, Kin)        layer-0 input, zero-padded to Kin = max(Din, H)
    h0_ref   : (Bp, H)          this layer's initial hidden state
    c0_ref   : (Bp, H)          this layer's initial cell state (f32)
    w_ref    : (Kin + H, 4H)    [W_ih ; 0-pad ; W_hh] pre-transposed, this layer
    b_ref    : (1, 4H)          b_ih + b_hh, this layer
    h_out_ref: (Bp, H)          this layer's new hidden state
    c_out_ref: (Bp, H)          this layer's new cell state (f32)
    xcat_ref : (Bp, Kin + H)    VMEM scratch carrying the layer input across steps
    """
    layer = pl.program_id(0)
    H = h0_ref.shape[-1]
    Kin = xcat_ref.shape[-1] - H

    # Layer 0 consumes the external input x; later layers consume the previous
    # layer's h, which was written into xcat_ref[:, :H] at the end of the
    # previous grid step (stale columns >= H are nullified by zero weight rows).
    @pl.when(layer == 0)
    def _():
        xcat_ref[:, :Kin] = x_ref[...].astype(xcat_ref.dtype)

    # This layer's recurrent input goes into the tail of the concat buffer.
    xcat_ref[:, Kin:] = h0_ref[...].astype(xcat_ref.dtype)

    # Single MXU matmul over the concatenated K dimension: (Bp, K) @ (K, 4H).
    gates = (jnp.dot(xcat_ref[...], w_ref[...],
                     preferred_element_type=jnp.float32)
             + b_ref[...].astype(jnp.float32))

    # PyTorch LSTMCell gate order: i, f, g, o.
    i_g = jax.nn.sigmoid(gates[:, 0 * H:1 * H])
    f_g = jax.nn.sigmoid(gates[:, 1 * H:2 * H])
    g_g = jnp.tanh(gates[:, 2 * H:3 * H])
    o_g = jax.nn.sigmoid(gates[:, 3 * H:4 * H])

    c_new = f_g * c0_ref[...].astype(jnp.float32) + i_g * g_g
    h_new = o_g * jnp.tanh(c_new)

    h_out_ref[...] = h_new.astype(h_out_ref.dtype)
    c_out_ref[...] = c_new.astype(c_out_ref.dtype)   # c kept in f32

    # Feed this layer's output forward as the next layer's input.
    xcat_ref[:, :H] = h_new.astype(xcat_ref.dtype)


# ----------------------------------------------------------------------------- wrapper
def prepare_fused_params(params, input_size, hidden, dtype=jnp.float32):
    """Pack per-layer (W_ih, W_hh, b_ih, b_hh) into stacked, pre-transposed slabs.

    Done ONCE, outside the step.  Returns
      w_stack: (L, Kin_max + H, 4H)  rows [0:Din_l] = W_ih_l.T, rows [Kin_max:] = W_hh_l.T,
                                     zero rows in between (so stale input cols are inert)
      b_stack: (L, 1, 4H)            b_ih + b_hh
    Set dtype=jnp.bfloat16 to halve weight HBM traffic (f32 accumulation is kept
    inside the kernel via preferred_element_type).
    """
    L = len(params)
    H = hidden
    kin_max = max(input_size, H)
    K = kin_max + H
    ws, bs = [], []
    for w_ih, w_hh, b_ih, b_hh in params:
        din = w_ih.shape[1]
        w = jnp.zeros((K, 4 * H), dtype)
        w = w.at[:din, :].set(jnp.transpose(w_ih).astype(dtype))
        w = w.at[kin_max:, :].set(jnp.transpose(w_hh).astype(dtype))
        ws.append(w)
        bs.append((b_ih + b_hh).astype(dtype).reshape(1, 4 * H))
    return jnp.stack(ws), jnp.stack(bs)


@jax.jit
def multilayer_lstm_cell(x, hiddens, cell_states, w_stack, b_stack):
    """Mirrors MultilayerLSTMCell.forward.

    x: (B, input_size); hiddens/cell_states: (L, B, H).
    Returns (stacked_hiddens, stacked_cell_states): each (L, B, H).
    """
    L, K, H4 = w_stack.shape
    H = H4 // 4
    kin_max = K - H
    B, din = x.shape

    # Pad batch to a multiple of 8 sublanes (f32); pad x to the uniform Kin width.
    bp = ((B + 7) // 8) * 8
    x_p = jnp.zeros((bp, kin_max), x.dtype).at[:B, :din].set(x)
    h_p = jnp.zeros((L, bp, H), hiddens.dtype).at[:, :B, :].set(hiddens)
    c_p = jnp.zeros((L, bp, H), jnp.float32).at[:, :B, :].set(
        cell_states.astype(jnp.float32))

    h_out, c_out = pl.pallas_call(
        _fused_lstm_kernel,
        out_shape=(jax.ShapeDtypeStruct((L, bp, H), hiddens.dtype),
                   jax.ShapeDtypeStruct((L, bp, H), jnp.float32)),
        grid=(L,),
        in_specs=[
            pl.BlockSpec((bp, kin_max), lambda l: (0, 0)),          # x (same every step)
            pl.BlockSpec((None, bp, H), lambda l: (l, 0, 0)),       # h0[l]
            pl.BlockSpec((None, bp, H), lambda l: (l, 0, 0)),       # c0[l]
            pl.BlockSpec((None, K, 4 * H), lambda l: (l, 0, 0)),    # W[l]  (pipelined)
            pl.BlockSpec((None, 1, 4 * H), lambda l: (l, 0, 0)),    # b[l]
        ],
        out_specs=(pl.BlockSpec((None, bp, H), lambda l: (l, 0, 0)),
                   pl.BlockSpec((None, bp, H), lambda l: (l, 0, 0))),
        scratch_shapes=[pltpu.VMEM((bp, K), w_stack.dtype)],        # layer-input carry
        compiler_params=pltpu.CompilerParams(
            # Layer axis is a true recurrence (h carried in scratch) -> arbitrary.
            dimension_semantics=("arbitrary",)),
    )(x_p, h_p, c_p, w_stack, b_stack)

    return h_out[:, :B, :], c_out[:, :B, :].astype(cell_states.dtype)


# ----------------------------------------------------------------------------- params / reference
def init_params(key, input_size, hidden_sizes, num_layers):
    """Deterministic param init matching nn.LSTMCell shapes (U(-1/sqrt(H), 1/sqrt(H)))."""
    if isinstance(hidden_sizes, int):
        sizes = [input_size] + [hidden_sizes] * num_layers
    else:
        sizes = [input_size] + list(hidden_sizes)
    # TODO(synk): heterogeneous hidden sizes would need per-layer H padding to
    # max(H) inside the fused kernel; this implementation requires a uniform H.
    assert len(set(sizes[1:])) == 1, "fused kernel requires a uniform hidden size"
    params = []
    for i in range(num_layers):
        din, H = sizes[i], sizes[i + 1]
        bound = 1.0 / (H ** 0.5)
        key, k0, k1, k2, k3 = jax.random.split(key, 5)
        w_ih = jax.random.uniform(k0, (4 * H, din), minval=-bound, maxval=bound,
                                  dtype=jnp.float32)
        w_hh = jax.random.uniform(k1, (4 * H, H), minval=-bound, maxval=bound,
                                  dtype=jnp.float32)
        b_ih = jax.random.uniform(k2, (4 * H,), minval=-bound, maxval=bound,
                                  dtype=jnp.float32)
        b_hh = jax.random.uniform(k3, (4 * H,), minval=-bound, maxval=bound,
                                  dtype=jnp.float32)
        params.append((w_ih, w_hh, b_ih, b_hh))
    return params


def _reference_multilayer_lstm(x, hiddens, cell_states, params):
    """Pure-JAX reference reproducing torch.nn.LSTMCell semantics."""
    curr = x
    out_h, out_c = [], []
    for (w_ih, w_hh, b_ih, b_hh), h, c in zip(params, list(hiddens), list(cell_states)):
        gates = curr @ w_ih.T + b_ih + h @ w_hh.T + b_hh
        H = h.shape[-1]
        i_g = jax.nn.sigmoid(gates[:, 0 * H:1 * H])
        f_g = jax.nn.sigmoid(gates[:, 1 * H:2 * H])
        g_g = jnp.tanh(gates[:, 2 * H:3 * H])
        o_g = jax.nn.sigmoid(gates[:, 3 * H:4 * H])
        c = f_g * c + i_g * g_g
        curr = o_g * jnp.tanh(c)
        out_h.append(curr)
        out_c.append(c)
    return jnp.stack(out_h), jnp.stack(out_c)


# ----------------------------------------------------------------------------- demo
if __name__ == "__main__":
    B = 2
    INPUT_SIZE = 32
    HIDDEN = 32
    NUM_LAYERS = 2

    key = jax.random.PRNGKey(0)
    kp, kx, kh, kc = jax.random.split(key, 4)

    params = init_params(kp, INPUT_SIZE, HIDDEN, NUM_LAYERS)
    x = jax.random.normal(kx, (B, INPUT_SIZE), dtype=jnp.float32)
    hiddens = jax.random.normal(kh, (NUM_LAYERS, B, HIDDEN), dtype=jnp.float32)
    cell_states = jax.random.normal(kc, (NUM_LAYERS, B, HIDDEN), dtype=jnp.float32)

    # Pre-pack weights once (f32 here for a strict tolerance check; pass
    # dtype=jnp.bfloat16 to halve weight HBM bytes in production).
    w_stack, b_stack = prepare_fused_params(params, INPUT_SIZE, HIDDEN,
                                            dtype=jnp.float32)

    h_stack, c_stack = multilayer_lstm_cell(x, hiddens, cell_states,
                                            w_stack, b_stack)
    h_stack = jax.block_until_ready(h_stack)
    c_stack = jax.block_until_ready(c_stack)

    # Correctness check vs. pure-JAX reference of the PyTorch semantics.
    h_ref, c_ref = _reference_multilayer_lstm(x, hiddens, cell_states, params)
    assert h_stack.shape == (NUM_LAYERS, B, HIDDEN)
    assert c_stack.shape == (NUM_LAYERS, B, HIDDEN)
    assert jnp.allclose(h_stack, h_ref, atol=1e-5, rtol=1e-5)
    assert jnp.allclose(c_stack, c_ref, atol=1e-5, rtol=1e-5)

    print("KERNEL_OK")
</pallas_src>

<mosaic_0001>
module attributes {stable_mosaic.version = 11 : i64} {
  func.func @_fused_lstm_kernel(%arg0: i32, %arg1: memref<8x32xf32, #tpu.memory_space<vmem>>, %arg2: memref<1x8x32xf32, #tpu.memory_space<vmem>>, %arg3: memref<1x8x32xf32, #tpu.memory_space<vmem>>, %arg4: memref<1x64x128xf32, #tpu.memory_space<vmem>>, %arg5: memref<1x1x128xf32, #tpu.memory_space<vmem>>, %arg6: memref<1x8x32xf32, #tpu.memory_space<vmem>>, %arg7: memref<1x8x32xf32, #tpu.memory_space<vmem>>, %arg8: memref<8x64xf32, #tpu.memory_space<vmem>>) attributes {dimension_semantics = [#tpu.dimension_semantics<arbitrary>], iteration_bounds = array<i64: 2>, scalar_prefetch = 0 : i64, scratch_operands = 1 : i64, tpu.core_type = #tpu.core_type<tc>, window_params = [{pipeline_mode = #tpu.pipeline_mode<synchronous>, transform_indices = @transform_0, window_bounds = array<i64: 8, 32>}, {transform_indices = @transform_1, window_bounds = array<i64: 1, 8, 32>}, {transform_indices = @transform_2, window_bounds = array<i64: 1, 8, 32>}, {transform_indices = @transform_3, window_bounds = array<i64: 1, 64, 128>}, {transform_indices = @transform_4, window_bounds = array<i64: 1, 1, 128>}, {transform_indices = @transform_5, window_bounds = array<i64: 1, 8, 32>}, {transform_indices = @transform_6, window_bounds = array<i64: 1, 8, 32>}]} {
    %c0_i32 = arith.constant 0 : i32
    %0 = arith.cmpi eq, %arg0, %c0_i32 : i32
    %1 = arith.extui %0 : i1 to i32
    %c0_i32_0 = arith.constant 0 : i32
    %2 = arith.cmpi ne, %1, %c0_i32_0 : i32
    scf.if %2 {
      %c0_26 = arith.constant 0 : index
      %c0_27 = arith.constant 0 : index
      %48 = vector.load %arg1[%c0_26, %c0_27] : memref<8x32xf32, #tpu.memory_space<vmem>>, vector<8x32xf32>
      %c0_28 = arith.constant 0 : index
      %c0_29 = arith.constant 0 : index
      %49 = vector.load %arg8[%c0_28, %c0_29] : memref<8x64xf32, #tpu.memory_space<vmem>>, vector<8x32xf32>
      tpu.vector_store %arg8[%c0_28, %c0_29], %48 {strides = array<i32>} : memref<8x64xf32, #tpu.memory_space<vmem>>, vector<8x32xf32>,
    } else {
    }
    %c0 = arith.constant 0 : index
    %c0_1 = arith.constant 0 : index
    %c0_2 = arith.constant 0 : index
    %3 = vector.load %arg2[%c0, %c0_1, %c0_2] : memref<1x8x32xf32, #tpu.memory_space<vmem>>, vector<1x8x32xf32>
    %4 = vector.shape_cast %3 : vector<1x8x32xf32> to vector<8x32xf32>
    %c0_3 = arith.constant 0 : index
    %c32 = arith.constant 32 : index
    %5 = vector.load %arg8[%c0_3, %c32] : memref<8x64xf32, #tpu.memory_space<vmem>>, vector<8x32xf32>
    tpu.vector_store %arg8[%c0_3, %c32], %4 {strides = array<i32>} : memref<8x64xf32, #tpu.memory_space<vmem>>, vector<8x32xf32>,
    %c0_4 = arith.constant 0 : index
    %c0_5 = arith.constant 0 : index
    %6 = vector.load %arg8[%c0_4, %c0_5] : memref<8x64xf32, #tpu.memory_space<vmem>>, vector<8x64xf32>
    %c0_6 = arith.constant 0 : index
    %c0_7 = arith.constant 0 : index
    %c0_8 = arith.constant 0 : index
    %7 = vector.load %arg4[%c0_6, %c0_7, %c0_8] : memref<1x64x128xf32, #tpu.memory_space<vmem>>, vector<1x64x128xf32>
    %8 = vector.shape_cast %7 : vector<1x64x128xf32> to vector<64x128xf32>
    %cst = arith.constant dense<0.000000e+00> : vector<8x128xf32>
    %9 = tpu.matmul %6, %8, %cst {dimension_numbers = #tpu.dot_dimension_numbers<[1], [0], [0], [1], [0, 0, 1, 1], [], []>} : vector<8x64xf32>, vector<64x128xf32>, vector<8x128xf32> -> vector<8x128xf32>
    %c0_9 = arith.constant 0 : index
    %c0_10 = arith.constant 0 : index
    %c0_11 = arith.constant 0 : index
    %10 = vector.load %arg5[%c0_9, %c0_10, %c0_11] : memref<1x1x128xf32, #tpu.memory_space<vmem>>, vector<1x1x128xf32>
    %11 = vector.shape_cast %10 : vector<1x1x128xf32> to vector<1x128xf32>
    %12 = vector.broadcast %11 : vector<1x128xf32> to vector<8x128xf32>
    %13 = arith.addf %9, %12 : vector<8x128xf32>
    %14 = vector.extract_strided_slice %13 {offsets = [0, 0], sizes = [8, 32], strides = [1, 1]} : vector<8x128xf32> to vector<8x32xf32>
    %15 = arith.negf %14 : vector<8x32xf32>
    %16 = math.exp %15 : vector<8x32xf32>
    %cst_12 = arith.constant 1.000000e+00 : f32
    %17 = vector.broadcast %cst_12 : f32 to vector<8x32xf32>
    %18 = arith.addf %17, %16 : vector<8x32xf32>
    %19 = arith.divf %17, %18 : vector<8x32xf32>
    %20 = vector.extract_strided_slice %13 {offsets = [0, 32], sizes = [8, 32], strides = [1, 1]} : vector<8x128xf32> to vector<8x32xf32>
    %21 = arith.negf %20 : vector<8x32xf32>
    %22 = math.exp %21 : vector<8x32xf32>
    %cst_13 = arith.constant 1.000000e+00 : f32
    %23 = vector.broadcast %cst_13 : f32 to vector<8x32xf32>
    %24 = arith.addf %23, %22 : vector<8x32xf32>
    %25 = arith.divf %23, %24 : vector<8x32xf32>
    %26 = vector.extract_strided_slice %13 {offsets = [0, 64], sizes = [8, 32], strides = [1, 1]} : vector<8x128xf32> to vector<8x32xf32>
    %27 = math.tanh %26 : vector<8x32xf32>
    %28 = vector.extract_strided_slice %13 {offsets = [0, 96], sizes = [8, 32], strides = [1, 1]} : vector<8x128xf32> to vector<8x32xf32>
    %29 = arith.negf %28 : vector<8x32xf32>
    %30 = math.exp %29 : vector<8x32xf32>
    %cst_14 = arith.constant 1.000000e+00 : f32
    %31 = vector.broadcast %cst_14 : f32 to vector<8x32xf32>
    %32 = arith.addf %31, %30 : vector<8x32xf32>
    %33 = arith.divf %31, %32 : vector<8x32xf32>
    %c0_15 = arith.constant 0 : index
    %c0_16 = arith.constant 0 : index
    %c0_17 = arith.constant 0 : index
    %34 = vector.load %arg3[%c0_15, %c0_16, %c0_17] : memref<1x8x32xf32, #tpu.memory_space<vmem>>, vector<1x8x32xf32>
    %35 = vector.shape_cast %34 : vector<1x8x32xf32> to vector<8x32xf32>
    %36 = arith.mulf %25, %35 : vector<8x32xf32>
    %37 = arith.mulf %19, %27 : vector<8x32xf32>
    %38 = arith.addf %36, %37 : vector<8x32xf32>
    %39 = math.tanh %38 : vector<8x32xf32>
    %40 = arith.mulf %33, %39 : vector<8x32xf32>
    %c0_18 = arith.constant 0 : index
    %c0_19 = arith.constant 0 : index
    %c0_20 = arith.constant 0 : index
    %41 = vector.load %arg6[%c0_18, %c0_19, %c0_20] : memref<1x8x32xf32, #tpu.memory_space<vmem>>, vector<1x8x32xf32>
    %42 = vector.shape_cast %41 : vector<1x8x32xf32> to vector<8x32xf32>
    %43 = vector.shape_cast %40 : vector<8x32xf32> to vector<1x8x32xf32>
    tpu.vector_store %arg6[%c0_18, %c0_19, %c0_20], %43 {strides = array<i32>} : memref<1x8x32xf32, #tpu.memory_space<vmem>>, vector<1x8x32xf32>,
    %c0_21 = arith.constant 0 : index
    %c0_22 = arith.constant 0 : index
    %c0_23 = arith.constant 0 : index
    %44 = vector.load %arg7[%c0_21, %c0_22, %c0_23] : memref<1x8x32xf32, #tpu.memory_space<vmem>>, vector<1x8x32xf32>
    %45 = vector.shape_cast %44 : vector<1x8x32xf32> to vector<8x32xf32>
    %46 = vector.shape_cast %38 : vector<8x32xf32> to vector<1x8x32xf32>
    tpu.vector_store %arg7[%c0_21, %c0_22, %c0_23], %46 {strides = array<i32>} : memref<1x8x32xf32, #tpu.memory_space<vmem>>, vector<1x8x32xf32>,
    %c0_24 = arith.constant 0 : index
    %c0_25 = arith.constant 0 : index
    %47 = vector.load %arg8[%c0_24, %c0_25] : memref<8x64xf32, #tpu.memory_space<vmem>>, vector<8x32xf32>
    tpu.vector_store %arg8[%c0_24, %c0_25], %40 {strides = array<i32>} : memref<8x64xf32, #tpu.memory_space<vmem>>, vector<8x32xf32>,
    return
  }
  func.func @transform_0(%arg0: i32) -> (i32, i32) {
    %c0_i32 = arith.constant 0 : i32
    %c0_i32_0 = arith.constant 0 : i32
    %c0_i32_1 = arith.constant 0 : i32
    return %c0_i32, %c0_i32_0 : i32, i32
  }
  func.func @transform_1(%arg0: i32) -> (i32, i32, i32) {
    %c0_i32 = arith.constant 0 : i32
    %c0_i32_0 = arith.constant 0 : i32
    %c0_i32_1 = arith.constant 0 : i32
    return %arg0, %c0_i32, %c0_i32_0 : i32, i32, i32
  }
  func.func @transform_2(%arg0: i32) -> (i32, i32, i32) {
    %c0_i32 = arith.constant 0 : i32
    %c0_i32_0 = arith.constant 0 : i32
    %c0_i32_1 = arith.constant 0 : i32
    return %arg0, %c0_i32, %c0_i32_0 : i32, i32, i32
  }
  func.func @transform_3(%arg0: i32) -> (i32, i32, i32) {
    %c0_i32 = arith.constant 0 : i32
    %c0_i32_0 = arith.constant 0 : i32
    %c0_i32_1 = arith.constant 0 : i32
    return %arg0, %c0_i32, %c0_i32_0 : i32, i32, i32
  }
  func.func @transform_4(%arg0: i32) -> (i32, i32, i32) {
    %c0_i32 = arith.constant 0 : i32
    %c0_i32_0 = arith.constant 0 : i32
    %c0_i32_1 = arith.constant 0 : i32
    return %arg0, %c0_i32, %c0_i32_0 : i32, i32, i32
  }
  func.func @transform_5(%arg0: i32) -> (i32, i32, i32) {
    %c0_i32 = arith.constant 0 : i32
    %c0_i32_0 = arith.constant 0 : i32
    %c0_i32_1 = arith.constant 0 : i32
    return %arg0, %c0_i32, %c0_i32_0 : i32, i32, i32
  }
  func.func @transform_6(%arg0: i32) -> (i32, i32, i32) {
    %c0_i32 = arith.constant 0 : i32
    %c0_i32_0 = arith.constant 0 : i32
    %c0_i32_1 = arith.constant 0 : i32
    return %arg0, %c0_i32, %c0_i32_0 : i32, i32, i32
  }
}

</mosaic_0001>

<llo_original>
// kernel: multilayer_lstm_cell.1
$region0: #{multilayer_lstm_cell.1}
  #allocation0 [shape = 'u32[]', space=smem, size = 0x4, offset = 0x4, fixed_abs, tag = 'smem constant byte address 0x4 - core index']
  #allocation1 [shape = 'u32[144,128]{1,0:T(1,128)}', space=vmem, size = 0x12000, scoped, tag = 'internal scratch']
  #allocation2 [shape = 'f32[8,64]{1,0:T(8,128)}', space=vmem, size = 0x1000, scoped, tag = 'scratch operand']
  %s0 = inlined_call_operand.vmem [shape: f32[8,32], index: 0, kind: input, shape index: {}]
  %s1 = inlined_call_operand.vmem [shape: f32[2,8,32], index: 1, kind: input, shape index: {}]
  %s2 = inlined_call_operand.vmem [shape: f32[2,8,32], index: 2, kind: input, shape index: {}]
  %s3 = inlined_call_operand.hbm [shape: f32[2,64,128], index: 3, kind: input, shape index: {}]
  %s4 = inlined_call_operand.vmem [shape: f32[2,1,128], index: 4, kind: input, shape index: {}]
  %s5 = inlined_call_operand.vmem [shape: f32[2,8,32], index: 5, kind: output, shape index: {0}]
  %s6 = inlined_call_operand.vmem [shape: f32[2,8,32], index: 6, kind: output, shape index: {1}]
  %7 = xla_tuple %s5, %s6
  %s8 = sld [smem:[#allocation0]]
  $region69: #{multilayer_lstm_cell.1} parent=0
    _
  %s10 = ssub.s32 1, %s8
  %s11 = scalar_select 0, %s10, %s8
  $region1: #{multilayer_lstm_cell.1} parent=0
    #allocation3 [shape = 'u8[65536]{0}', space=vmem, size = 0x10000, scoped, tag = 'input window, operand 3']
    #allocation4 [shape = 's32[2]{0}', space=sflag, size = 0x8, scoped, tag = 'scoped memory for multilayer_lstm_cell.1']
    %12 = vsyncpa [#allocation4], 0
    %s13 = scalar_lea.sflag [#allocation4], 1
    %14 = vsyncpa %s13, 0
    loop: start=0, step=1, limit=4
    $region2: #{multilayer_lstm_cell.1} parent=1 // loop_pre_header
      _
    $region3: #{multilayer_lstm_cell.1} parent=1 // loop_header
      %s16 = sphi 0, %s20
      %p17 = scmp.ge.s32.totalorder %s16, 4
      %s24 = sphi 0, %s24
      %s26 = sphi 0, %s24
      %s27 = sphi 0, %s26
      %s41 = sphi 0, %s27
      %s47 = sphi 0, %s49
      %s50 = sphi 0, %s47
      %s51 = sphi 0, %s50
      %s67 = sphi 0, %s51
      %s73 = sphi 0, %s75
      %s76 = sphi 0, %s73
      %s77 = sphi 0, %s76
      %s93 = sphi 0, %s77
      %s99 = sphi 0, %s101
      %s102 = sphi 0, %s99
      %s103 = sphi 0, %s102
      %s119 = sphi 0, %s103
      %s125 = sphi 0, %s127
      %s128 = sphi 0, %s125
      %s129 = sphi 0, %s128
      %s145 = sphi 0, %s129
      %s151 = sphi 0, %s153
      %s154 = sphi 0, %s151
      %s155 = sphi 0, %s154
      %s171 = sphi 0, %s155
      %s177 = sphi 0, %s179
      %s180 = sphi 0, %s177
      %s181 = sphi 0, %s180
      %s197 = sphi 0, %s181
    $region4: #{multilayer_lstm_cell.1} parent=1 // loop_header_branch
      %19 = sbr.rel (%p17) target = $region8
    $region5: #{multilayer_lstm_cell.1} parent=1 // loop_body
      %s21 = ssub.s32 %s16, 1
      %s22 = ssub.s32 %s16, 2
      %s23 = sadd.s32 %s16, 1
      %s25 = sadd.s32 %s24, 1
      %p28 = scmp.eq.s32.totalorder %s16, 1
      %p29 = scmp.ne.s32.totalorder %s24, %s26
      %p30 = scmp.eq.s32.totalorder %s16, 0
      %p31 = por %p29, %p30
      %p32 = scmp.ne.s32.totalorder %s24, %s26
      %p33 = scmp.eq.s32.totalorder %s21, 1
      %p34 = por %p32, %p33
      %p35 = scmp.ne.s32.totalorder %s26, %s27
      %p36 = scmp.eq.s32.totalorder %s21, 0
      %p37 = por %p35, %p36
      %p38 = scmp.ne.s32.totalorder %s26, %s27
      %p39 = scmp.eq.s32.totalorder %s22, 1
      %p40 = por %p38, %p39
      %p42 = scmp.ne.s32.totalorder %s27, %s41
      %p43 = scmp.eq.s32.totalorder %s22, 0
      %p44 = por %p42, %p43
      %s45 = ssub.s32 %s16, %s23
      %p46 = scmp.eq.s32.totalorder %s45, 0
      %s48 = sadd.s32 %s47, 1
      %s49 = scalar_select %p46, %s47, %s48
      %p52 = pneg %p46
      %p53 = scmp.eq.s32.totalorder %s16, 1
      %p54 = por %p52, %p53
      %p55 = scmp.ne.s32.totalorder %s47, %s50
      %p56 = scmp.eq.s32.totalorder %s16, 0
      %p57 = por %p55, %p56
      %p58 = scmp.ne.s32.totalorder %s47, %s50
      %p59 = scmp.eq.s32.totalorder %s21, 1
      %p60 = por %p58, %p59
      %p61 = scmp.ne.s32.totalorder %s50, %s51
      %p62 = scmp.eq.s32.totalorder %s21, 0
      %p63 = por %p61, %p62
      %p64 = scmp.ne.s32.totalorder %s50, %s51
      %p65 = scmp.eq.s32.totalorder %s22, 1
      %p66 = por %p64, %p65
      %p68 = scmp.ne.s32.totalorder %s51, %s67
      %p69 = scmp.eq.s32.totalorder %s22, 0
      %p70 = por %p68, %p69
      %s71 = ssub.s32 %s16, %s23
      %p72 = scmp.eq.s32.totalorder %s71, 0
      %s74 = sadd.s32 %s73, 1
      %s75 = scalar_select %p72, %s73, %s74
      %p78 = pneg %p72
      %p79 = scmp.eq.s32.totalorder %s16, 1
      %p80 = por %p78, %p79
      %p81 = scmp.ne.s32.totalorder %s73, %s76
      %p82 = scmp.eq.s32.totalorder %s16, 0
      %p83 = por %p81, %p82
      %p84 = scmp.ne.s32.totalorder %s73, %s76
      %p85 = scmp.eq.s32.totalorder %s21, 1
      %p86 = por %p84, %p85
      %p87 = scmp.ne.s32.totalorder %s76, %s77
      %p88 = scmp.eq.s32.totalorder %s21, 0
      %p89 = por %p87, %p88
      %p90 = scmp.ne.s32.totalorder %s76, %s77
      %p91 = scmp.eq.s32.totalorder %s22, 1
      %p92 = por %p90, %p91
      %p94 = scmp.ne.s32.totalorder %s77, %s93
      %p95 = scmp.eq.s32.totalorder %s22, 0
      %p96 = por %p94, %p95
      %s97 = ssub.s32 %s16, %s23
      %p98 = scmp.eq.s32.totalorder %s97, 0
      %s100 = sadd.s32 %s99, 1
      %s101 = scalar_select %p98, %s99, %s100
      %p104 = pneg %p98
      %p105 = scmp.eq.s32.totalorder %s16, 1
      %p106 = por %p104, %p105
      %p107 = scmp.ne.s32.totalorder %s99, %s102
      %p108 = scmp.eq.s32.totalorder %s16, 0
      %p109 = por %p107, %p108
      %p110 = scmp.ne.s32.totalorder %s99, %s102
      %p111 = scmp.eq.s32.totalorder %s21, 1
      %p112 = por %p110, %p111
      %p113 = scmp.ne.s32.totalorder %s102, %s103
      %p114 = scmp.eq.s32.totalorder %s21, 0
      %p115 = por %p113, %p114
      %p116 = scmp.ne.s32.totalorder %s102, %s103
      %p117 = scmp.eq.s32.totalorder %s22, 1
      %p118 = por %p116, %p117
      %p120 = scmp.ne.s32.totalorder %s103, %s119
      %p121 = scmp.eq.s32.totalorder %s22, 0
      %p122 = por %p120, %p121
      %s123 = ssub.s32 %s16, %s23
      %p124 = scmp.eq.s32.totalorder %s123, 0
      %s126 = sadd.s32 %s125, 1
      %s127 = scalar_select %p124, %s125, %s126
      %p130 = pneg %p124
      %p131 = scmp.eq.s32.totalorder %s16, 1
      %p132 = por %p130, %p131
      %p133 = scmp.ne.s32.totalorder %s125, %s128
      %p134 = scmp.eq.s32.totalorder %s16, 0
      %p135 = por %p133, %p134
      %p136 = scmp.ne.s32.totalorder %s125, %s128
      %p137 = scmp.eq.s32.totalorder %s21, 1
      %p138 = por %p136, %p137
      %p139 = scmp.ne.s32.totalorder %s128, %s129
      %p140 = scmp.eq.s32.totalorder %s21, 0
      %p141 = por %p139, %p140
      %p142 = scmp.ne.s32.totalorder %s128, %s129
      %p143 = scmp.eq.s32.totalorder %s22, 1
      %p144 = por %p142, %p143
      %p146 = scmp.ne.s32.totalorder %s129, %s145
      %p147 = scmp.eq.s32.totalorder %s22, 0
      %p148 = por %p146, %p147
      %s149 = ssub.s32 %s16, %s23
      %p150 = scmp.eq.s32.totalorder %s149, 0
      %s152 = sadd.s32 %s151, 1
      %s153 = scalar_select %p150, %s151, %s152
      %p156 = pneg %p150
      %p157 = scmp.eq.s32.totalorder %s16, 1
      %p158 = por %p156, %p157
      %p159 = scmp.ne.s32.totalorder %s151, %s154
      %p160 = scmp.eq.s32.totalorder %s16, 0
      %p161 = por %p159, %p160
      %p162 = scmp.ne.s32.totalorder %s151, %s154
      %p163 = scmp.eq.s32.totalorder %s21, 1
      %p164 = por %p162, %p163
      %p165 = scmp.ne.s32.totalorder %s154, %s155
      %p166 = scmp.eq.s32.totalorder %s21, 0
      %p167 = por %p165, %p166
      %p168 = scmp.ne.s32.totalorder %s154, %s155
      %p169 = scmp.eq.s32.totalorder %s22, 1
      %p170 = por %p168, %p169
      %p172 = scmp.ne.s32.totalorder %s155, %s171
      %p173 = scmp.eq.s32.totalorder %s22, 0
      %p174 = por %p172, %p173
      %s175 = ssub.s32 %s16, %s23
      %p176 = scmp.eq.s32.totalorder %s175, 0
      %s178 = sadd.s32 %s177, 1
      %s179 = scalar_select %p176, %s177, %s178
      %p182 = pneg %p176
      %p183 = scmp.eq.s32.totalorder %s16, 1
      %p184 = por %p182, %p183
      %p185 = scmp.ne.s32.totalorder %s177, %s180
      %p186 = scmp.eq.s32.totalorder %s16, 0
      %p187 = por %p185, %p186
      %p188 = scmp.ne.s32.totalorder %s177, %s180
      %p189 = scmp.eq.s32.totalorder %s21, 1
      %p190 = por %p188, %p189
      %p191 = scmp.ne.s32.totalorder %s180, %s181
      %p192 = scmp.eq.s32.totalorder %s21, 0
      %p193 = por %p191, %p192
      %p194 = scmp.ne.s32.totalorder %s180, %s181
      %p195 = scmp.eq.s32.totalorder %s22, 1
      %p196 = por %p194, %p195
      %p198 = scmp.ne.s32.totalorder %s181, %s197
      %p199 = scmp.eq.s32.totalorder %s22, 0
      %p200 = por %p198, %p199
      %p201 = scmp.le.s32.totalorder 1, %s16
      %p202 = scmp.lt.s32.totalorder %s16, 3
      %p203 = pnand %p201, %p202
      %p204 = pneg %p203
      // Predicated region
      $region9: #{multilayer_lstm_cell.1} parent=5 // pred_check
        _
      $region10: #{multilayer_lstm_cell.1} parent=5 // pred_check_branch
        %206 = sbr.rel (%p203) target = $region12
      $region11: #{multilayer_lstm_cell.1} parent=5 // pred_region
        %s207 = ssub.s32 %s16, 1
        // Predicated region
        $region13: #{multilayer_lstm_cell.1} parent=11 // pred_check
          %p208 = pneg %p37
        $region14: #{multilayer_lstm_cell.1} parent=11 // pred_check_branch
          %210 = sbr.rel (%p208) target = $region16
        $region15: #{multilayer_lstm_cell.1} parent=11 // pred_region
          _
        $region16: #{multilayer_lstm_cell.1} parent=11 // pred_fallthru
          _
      $region12: #{multilayer_lstm_cell.1} parent=5 // pred_fallthru
        _
      %p211 = scmp.lt.s32.totalorder %s16, 2
      // Predicated region
      $region17: #{multilayer_lstm_cell.1} parent=5 // pred_check
        %p212 = pneg %p211
      $region18: #{multilayer_lstm_cell.1} parent=5 // pred_check_branch
        %214 = sbr.rel (%p212) target = $region20
      $region19: #{multilayer_lstm_cell.1} parent=5 // pred_region
        // Predicated region
        $region21: #{multilayer_lstm_cell.1} parent=19 // pred_check
          %p215 = pneg %p57
        $region22: #{multilayer_lstm_cell.1} parent=19 // pred_check_branch
          %217 = sbr.rel (%p215) target = $region24
        $region23: #{multilayer_lstm_cell.1} parent=19 // pred_region
          %p218 = scmp.lt.s32.totalorder %s16, 1
          %s219 = scalar_select %p218, %s16, 1
          %s220 = smul.addr %s219, 8
          %s221 = scalar_lea.vmem %s1, %s220
        $region24: #{multilayer_lstm_cell.1} parent=19 // pred_fallthru
          _
        // Predicated region
        $region25: #{multilayer_lstm_cell.1} parent=19 // pred_check
          %p222 = pneg %p83
        $region26: #{multilayer_lstm_cell.1} parent=19 // pred_check_branch
          %224 = sbr.rel (%p222) target = $region28
        $region27: #{multilayer_lstm_cell.1} parent=19 // pred_region
          %p225 = scmp.lt.s32.totalorder %s16, 1
          %s226 = scalar_select %p225, %s16, 1
          %s227 = smul.addr %s226, 8
          %s228 = scalar_lea.vmem %s2, %s227
        $region28: #{multilayer_lstm_cell.1} parent=19 // pred_fallthru
          _
        // Predicated region
        $region29: #{multilayer_lstm_cell.1} parent=19 // pred_check
          %p229 = pneg %p109
        $region30: #{multilayer_lstm_cell.1} parent=19 // pred_check_branch
          %231 = sbr.rel (%p229) target = $region32
        $region31: #{multilayer_lstm_cell.1} parent=19 // pred_region
          %s232 = sand.u32 %s99, 1
          %s233 = scalar_lea.sflag [#allocation4], %s232
          %s234 = sand.u32 %s99, 1
          %s235 = smul.addr %s234, 64
          %s236 = scalar_lea.vmem [#allocation3], %s235
          %s238 = ssub.s32 1024, 1024
          %239 = vsyncadd %s233, %s238
          %s240 = smul.addr %s16, 8
          %s241 = smul.addr %s240, 128
          %s242 = scalar_lea.hbm %s3, %s241
          %s243 = sshll.u32 %s236, 4
          %s244 = int_to_ptr.vmem [resolvable:$true] %s243
          %249 = dma.hbm_to_vmem [thread:$0]  %s242, 1024, %s244, %s233, 128, 128, 8
        $region32: #{multilayer_lstm_cell.1} parent=19 // pred_fallthru
          _
        // Predicated region
        $region33: #{multilayer_lstm_cell.1} parent=19 // pred_check
          %p250 = pneg %p135
        $region34: #{multilayer_lstm_cell.1} parent=19 // pred_check_branch
          %252 = sbr.rel (%p250) target = $region36
        $region35: #{multilayer_lstm_cell.1} parent=19 // pred_region
          %p253 = scmp.lt.s32.totalorder %s16, 1
          %s254 = scalar_select %p253, %s16, 1
          %s255 = scalar_lea.vmem %s4, %s254
        $region36: #{multilayer_lstm_cell.1} parent=19 // pred_fallthru
          _
      $region20: #{multilayer_lstm_cell.1} parent=5 // pred_fallthru
        _
      %p256 = scmp.le.s32.totalorder 1, %s16
      %p257 = scmp.lt.s32.totalorder %s16, 3
      %p258 = pnand %p256, %p257
      %p259 = pneg %p258
      // Predicated region
      $region37: #{multilayer_lstm_cell.1} parent=5 // pred_check
        _
      $region38: #{multilayer_lstm_cell.1} parent=5 // pred_check_branch
        %261 = sbr.rel (%p258) target = $region40
      $region39: #{multilayer_lstm_cell.1} parent=5 // pred_region
        %s262 = ssub.s32 %s16, 1
        %s263 = sand.u32 %s102, 1
        %s264 = scalar_lea.sflag [#allocation4], %s263
        %s265 = sand.u32 %s102, 1
        %s266 = smul.addr %s265, 64
        %s267 = scalar_lea.vmem [#allocation3], %s266
        // Predicated region
        $region41: #{multilayer_lstm_cell.1} parent=39 // pred_check
          %p268 = pneg %p115
        $region42: #{multilayer_lstm_cell.1} parent=39 // pred_check_branch
          %270 = sbr.rel (%p268) target = $region44
        $region43: #{multilayer_lstm_cell.1} parent=39 // pred_region
          %271 = dma.done %s264, 1024
        $region44: #{multilayer_lstm_cell.1} parent=39 // pred_fallthru
          _
        %p272 = pneg %p37
        %p273 = pneg %p34
        %p274 = scmp.lt.s32.totalorder %s21, 1
        %s275 = scalar_select %p274, %s21, 1
        %s276 = smul.addr %s275, 8
        %s277 = scalar_lea.vmem %s1, %s276
        %p278 = pneg %p63
        %p279 = pneg %p60
        %p280 = scmp.lt.s32.totalorder %s21, 1
        %s281 = scalar_select %p280, %s21, 1
        %s282 = smul.addr %s281, 8
        %s283 = scalar_lea.vmem %s2, %s282
        %p284 = pneg %p89
        %p285 = pneg %p86
        %s286 = sand.u32 %s102, 1
        %s287 = scalar_lea.sflag [#allocation4], %s286
        %s288 = sand.u32 %s102, 1
        %s289 = smul.addr %s288, 64
        %s290 = scalar_lea.vmem [#allocation3], %s289
        %p291 = pneg %p115
        %p292 = pneg %p112
        %p293 = scmp.lt.s32.totalorder %s21, 1
        %s294 = scalar_select %p293, %s21, 1
        %s295 = scalar_lea.vmem %s4, %s294
        %p296 = pneg %p141
        %p297 = pneg %p138
        %p298 = pneg %p167
        %p299 = pneg %p164
        %p300 = scmp.lt.s32.totalorder %s21, 1
        %s301 = scalar_select %p300, %s21, 1
        %s302 = smul.addr %s301, 8
        %s303 = scalar_lea.vmem %s5, %s302
        %p304 = pneg %p193
        %p305 = pneg %p190
        %p306 = scmp.lt.s32.totalorder %s21, 1
        %s307 = scalar_select %p306, %s21, 1
        %s308 = smul.addr %s307, 8
        %s309 = scalar_lea.vmem %s6, %s308
        %p310 = scmp.lt.s32.totalorder %s21, 1
        %s311 = scalar_select %p310, %s21, 1
        %s312 = smul.addr %s311, 8
        %s313 = scalar_lea.vmem %s1, %s312
        %p314 = scmp.lt.s32.totalorder %s21, 1
        %s315 = scalar_select %p314, %s21, 1
        %s316 = smul.addr %s315, 8
        %s317 = scalar_lea.vmem %s2, %s316
        %p318 = scmp.lt.s32.totalorder %s21, 1
        %s319 = scalar_select %p318, %s21, 1
        %s320 = scalar_lea.vmem %s4, %s319
        %p321 = scmp.lt.s32.totalorder %s21, 1
        %s322 = scalar_select %p321, %s21, 1
        %s323 = smul.addr %s322, 8
        %s324 = scalar_lea.vmem %s5, %s323
        %p325 = scmp.lt.s32.totalorder %s21, 1
        %s326 = scalar_select %p325, %s21, 1
        %s327 = smul.addr %s326, 8
        %s328 = scalar_lea.vmem %s6, %s327
        %p329 = scmp.eq.s32.totalorder %s21, 0
        // Predicated region
        $region45: #{multilayer_lstm_cell.1} parent=39 // pred_check
          %p330 = pneg %p329
        $region46: #{multilayer_lstm_cell.1} parent=39 // pred_check_branch
          %332 = sbr.rel (%p330) target = $region48
        $region47: #{multilayer_lstm_cell.1} parent=39 // pred_region
          %v333 = vld [vmem:[%s0] sm:$0xff]
          %vm334 = vcmask 261120
          %335 = vst.msk [vmem:[#allocation2] sm:$0xff] %vm334, %v333
        $region48: #{multilayer_lstm_cell.1} parent=39 // pred_fallthru
          _
        %v336 = vld [vmem:[%s313] sm:$0xff]
        %338 = vrot.lane.b32.xlu0 %v336, 32
        %v339 = vpop.permute.xlu0 %338
        %vm341 = vcmask 523520
        %342 = vst.msk [vmem:[#allocation2] sm:$0xff] %vm341, %v339
        %v343 = vld [vmem:[#allocation2] sm:$0xff]
        %v344 = vld [vmem:[%s267] sm:$0xff]
        %v345 = vld [vmem:[%s267 + $0x8] sm:$0xff]
        %v346 = vld [vmem:[%s267 + $0x10] sm:$0xff]
        %v347 = vld [vmem:[%s267 + $0x18] sm:$0xff]
        %v348 = vld [vmem:[%s267 + $0x20] sm:$0xff]
        %v349 = vld [vmem:[%s267 + $0x28] sm:$0xff]
        %v350 = vld [vmem:[%s267 + $0x30] sm:$0xff]
        %v351 = vld [vmem:[%s267 + $0x38] sm:$0xff]
        %v352 = vld [vmem:[%s320] sm:$0x1]
        %v354 = vlaneseq
        %v355 = vshrl.u32 %v354, 7
        %v356 = vsub.s32 0, %v355
        %v357 = vrot.slane %v352, %v356
        %vm359 = vcmask 523264
        %v361 = vsel %vm359, %v343, 0
        %363 = vmatprep.subr.mxu0 0.0
        %364 = vmatpush1.msra.mxu0 %v344
        %365 = vmatprep.subr.mxu0 0.0
        %366 = vmatpush1.msra.mxu0 %v345
        %367 = vmatprep.subr.mxu0 0.0
        %368 = vmatpush1.msra.mxu0 %v346
        %369 = vmatprep.subr.mxu0 0.0
        %370 = vmatpush1.msra.mxu0 %v347
        %371 = vmatprep.subr.mxu0 0.0
        %372 = vmatpush1.msra.mxu0 %v348
        %373 = vmatprep.subr.mxu0 0.0
        %374 = vmatpush1.msra.mxu0 %v349
        %375 = vmatprep.subr.mxu0 0.0
        %376 = vmatpush1.msra.mxu0 %v350
        %377 = vmatprep.subr.mxu0 0.0
        %378 = vmatpush1.msra.mxu0 %v351
        %379 = vmatprep.subr.mxu0 0.0
        %380 = vmatpush1.msra.mxu0 0.0
        %381 = vmatprep.subr.mxu0 0.0
        %382 = vmatpush1.msra.mxu0 0.0
        %383 = vmatprep.subr.mxu0 0.0
        %384 = vmatpush1.msra.mxu0 0.0
        %385 = vmatprep.subr.mxu0 0.0
        %386 = vmatpush1.msra.mxu0 0.0
        %387 = vmatprep.subr.mxu0 0.0
        %388 = vmatpush1.msra.mxu0 0.0
        %389 = vmatprep.subr.mxu0 0.0
        %390 = vmatpush1.msra.mxu0 0.0
        %391 = vmatprep.subr.mxu0 0.0
        %392 = vmatpush1.msra.mxu0 0.0
        %393 = vmatprep.subr.mxu0 0.0
        %394 = vmatpush1.msra.mxu0 0.0
        %395 = vmatprep.subr.mxu0 0.0
        %396 = vmatpush1.msra.mxu0 0.0
        %397 = vmatprep.subr.mxu0 0.0
        %398 = vmatpush1.msra.mxu0 0.0
        %399 = vmatprep.subr.mxu0 0.0
        %400 = vmatpush1.msra.mxu0 0.0
        %401 = vmatprep.subr.mxu0 0.0
        %402 = vmatpush1.msra.mxu0 0.0
        %403 = vmatprep.subr.mxu0 0.0
        %404 = vmatpush1.msra.mxu0 0.0
        %405 = vmatprep.subr.mxu0 0.0
        %406 = vmatpush1.msra.mxu0 0.0
        %407 = vmatprep.subr.mxu0 0.0
        %408 = vmatpush1.msra.mxu0 0.0
        %409 = vmatprep.subr.mxu0 0.0
        %410 = vmatpush1.msra.mxu0 0.0
        %411 = vmatprep.subr.mxu0 0.0
        %412 = vmatpush1.msra.mxu0 0.0
        %413 = vmatprep.subr.mxu0 0.0
        %414 = vmatpush1.msra.mxu0 0.0
        %415 = vmatprep.subr.mxu0 0.0
        %416 = vmatpush1.msra.mxu0 0.0
        %417 = vmatprep.subr.mxu0 0.0
        %418 = vmatpush1.msra.mxu0 0.0
        %419 = vmatprep.subr.mxu0 0.0
        %420 = vmatpush1.msra.mxu0 0.0
        %421 = vmatprep.subr.mxu0 0.0
        %422 = vmatpush1.msra.mxu0 0.0
        %423 = vmatprep.subr.mxu0 0.0
        %424 = vmatpush1.msra.mxu0 0.0
        %425 = vmatprep.subr.mxu0 0.0
        %426 = vmatpush1.msra.mxu0 0.0
        %427 = vmatprep.mubr.f32.mxu0 0.0
        %428 = vmatmul.mubr.f32.gmra.mrb[0].mxu0 %v361
        %v429 = vpop.f32.mrb[0].mxu0
        %v430 = vadd.f32 %v357, %v429
        %v431 = vpop.f32.mrb[0].mxu0
        %432 = vdwg.mxu0
        %v433 = vxor.u32 %v430, 2147483648
        %v434 = vmul.f32 %v433, 1.442695
        %v435 = vpow.pop %v434
        %v436 = vadd.f32 %v435, 1.0
        %v437 = vrcp.pop %v436
        %v438 = vmul.f32 1.0, %v437
        %v439 = vtanh.pop %v430
        %v440 = vld [vmem:[%s317] sm:$0xff]
        %442 = vrot.lane.b32.xlu0 %v440, 32
        %v443 = vpop.permute.xlu0 %442
        %v445 = vmul.f32 %v438, %v443
        %447 = vrot.lane.b32.xlu0 %v439, 64
        %v448 = vpop.permute.xlu0 %447
        %v450 = vmul.f32 %v438, %v448
        %452 = vrot.lane.b32.xlu0 %v450, 32
        %v453 = vpop.permute.xlu0 %452
        %v455 = vadd.f32 %v445, %v453
        %v456 = vtanh.pop %v455
        %458 = vrot.lane.b32.xlu0 %v456, 64
        %v459 = vpop.permute.xlu0 %458
        %v461 = vmul.f32 %v438, %v459
        %463 = vrot.lane.b32.xlu0 %v461, 32
        %v464 = vpop.permute.xlu0 %463
        %vm466 = vcmask 261120
        %467 = vst.msk [vmem:[%s324] sm:$0xff] %vm466, %v464
        %469 = vrot.lane.b32.xlu0 %v455, 96
        %v470 = vpop.permute.xlu0 %469
        %472 = vst.msk [vmem:[%s328] sm:$0xff] %vm466, %v470
        %473 = vst.msk [vmem:[#allocation2] sm:$0xff] %vm466, %v464
        %p474 = scmp.lt.s32.totalorder %s21, 1
        %s475 = scalar_select %p474, %s21, 1
        %s476 = smul.addr %s475, 8
        %s477 = scalar_lea.vmem %s5, %s476
        %p478 = scmp.lt.s32.totalorder %s21, 1
        %s479 = scalar_select %p478, %s21, 1
        %s480 = smul.addr %s479, 8
        %s481 = scalar_lea.vmem %s6, %s480
        // Predicated region
        $region49: #{multilayer_lstm_cell.1} parent=39 // pred_check
          %p482 = pneg %p164
        $region50: #{multilayer_lstm_cell.1} parent=39 // pred_check_branch
          %484 = sbr.rel (%p482) target = $region52
        $region51: #{multilayer_lstm_cell.1} parent=39 // pred_region
          _
        $region52: #{multilayer_lstm_cell.1} parent=39 // pred_fallthru
          _
        // Predicated region
        $region53: #{multilayer_lstm_cell.1} parent=39 // pred_check
          %p485 = pneg %p190
        $region54: #{multilayer_lstm_cell.1} parent=39 // pred_check_branch
          %487 = sbr.rel (%p485) target = $region56
        $region55: #{multilayer_lstm_cell.1} parent=39 // pred_region
          _
        $region56: #{multilayer_lstm_cell.1} parent=39 // pred_fallthru
          _
      $region40: #{multilayer_lstm_cell.1} parent=5 // pred_fallthru
        _
      %p488 = scmp.le.s32.totalorder 2, %s16
      // Predicated region
      $region57: #{multilayer_lstm_cell.1} parent=5 // pred_check
        %p489 = pneg %p488
      $region58: #{multilayer_lstm_cell.1} parent=5 // pred_check_branch
        %491 = sbr.rel (%p489) target = $region60
      $region59: #{multilayer_lstm_cell.1} parent=5 // pred_region
        %s492 = ssub.s32 %s16, 2
        // Predicated region
        $region61: #{multilayer_lstm_cell.1} parent=59 // pred_check
          %p493 = pneg %p170
        $region62: #{multilayer_lstm_cell.1} parent=59 // pred_check_branch
          %495 = sbr.rel (%p493) target = $region64
        $region63: #{multilayer_lstm_cell.1} parent=59 // pred_region
          %p496 = scmp.lt.s32.totalorder %s22, 1
          %s497 = scalar_select %p496, %s22, 1
          %s498 = smul.addr %s497, 8
          %s499 = scalar_lea.vmem %s5, %s498
        $region64: #{multilayer_lstm_cell.1} parent=59 // pred_fallthru
          _
        // Predicated region
        $region65: #{multilayer_lstm_cell.1} parent=59 // pred_check
          %p500 = pneg %p196
        $region66: #{multilayer_lstm_cell.1} parent=59 // pred_check_branch
          %502 = sbr.rel (%p500) target = $region68
        $region67: #{multilayer_lstm_cell.1} parent=59 // pred_region
          %p503 = scmp.lt.s32.totalorder %s22, 1
          %s504 = scalar_select %p503, %s22, 1
          %s505 = smul.addr %s504, 8
          %s506 = scalar_lea.vmem %s6, %s505
        $region68: #{multilayer_lstm_cell.1} parent=59 // pred_fallthru
          _
      $region60: #{multilayer_lstm_cell.1} parent=5 // pred_fallthru
        _
    $region6: #{multilayer_lstm_cell.1} parent=1 // loop_footer
      %s20 = sadd.s32 1, %s16
    $region7: #{multilayer_lstm_cell.1} parent=1 // loop_footer_branch
      %15 = sbr.rel target = $region3
    $region8: #{multilayer_lstm_cell.1} parent=1 // loop_exit
      _
    %507 = vsyncpa [#allocation4], 1
    %s508 = scalar_lea.sflag [#allocation4], 1
    %509 = vsyncpa %s508, 1

</llo_original>
